<compile_context>
chip_gen: v7x
topology: tpu7x:2x2x1
jax: 0.10.0
libtpu: 0.0.40
codegen_flags: <defaults>
</compile_context>

<pallas_src>
import functools

import jax
import jax.numpy as jnp
from jax.experimental import pallas as pl
from jax.experimental.pallas import tpu as pltpu

LN_EPS = 1e-5


def _round_up(x, m):
    return ((x + m - 1) // m) * m


def _use_bf16_tanh():
    # bf16 EUP exists on v6e / v7x; keep the tanh in f32 on older chips (v5e etc.).
    try:
        kind = jax.devices()[0].device_kind.lower()
    except Exception:
        return False
    return ("v6" in kind) or ("v7" in kind)


# ----------------------------------------------------------------------------- kernel
def _projection_kernel(x_ref, w_ref, p_ref, o_ref, *, p_real, tanh_bf16):
    """One (batch_block, k_block) step of LayerNorm(Linear(tanh(x)))."""
    k = pl.program_id(1)

    x = x_ref[...]
    if tanh_bf16:
        xt = jnp.tanh(x.astype(jnp.bfloat16))                  # bf16 EUP (v6e/v7x)
    else:
        xt = jnp.tanh(x.astype(jnp.float32)).astype(jnp.bfloat16)
    partial = jnp.dot(xt, w_ref[...], preferred_element_type=jnp.float32)

    # Output block index is constant across k -> o_ref (f32) is the accumulator.
    @pl.when(k == 0)
    def _():
        o_ref[...] = partial

    @pl.when(k != 0)
    def _():
        o_ref[...] += partial

    @pl.when(k == pl.num_programs(1) - 1)
    def _():
        params = p_ref[...]                                    # (3, P_pad): bias, gamma, beta
        y = o_ref[...] + params[0:1, :]
        # Padded lanes of y are exactly zero (padded weight/bias columns are zero),
        # so unmasked sums divided by the real width give exact LayerNorm stats.
        inv_p = 1.0 / p_real
        mean = jnp.sum(y, axis=-1, keepdims=True) * inv_p
        var = jnp.sum(y * y, axis=-1, keepdims=True) * inv_p - mean * mean
        y_norm = (y - mean) * jax.lax.rsqrt(var + LN_EPS)
        o_ref[...] = (y_norm * params[1:2, :] + params[2:3, :]).astype(o_ref.dtype)


# ----------------------------------------------------------------------------- wrapper
def prepare_projection_params(w_t, b, gamma, beta):
    """One-time (per-weight) preparation: pad to lane-friendly sizes and cast to bf16.

    w_t: (H, P) Linear weight, already transposed.  b/gamma/beta: (P,).
    Returns (w_bf16 (H_pad, P_pad), packed (3, P_pad) f32, p_real).
    """
    H, P = w_t.shape
    H_pad = _round_up(H, 128)
    P_pad = _round_up(P, 128)

    w_p = w_t
    if (H_pad, P_pad) != (H, P):
        w_p = jnp.pad(w_t, ((0, H_pad - H), (0, P_pad - P)))
    w_bf16 = w_p.astype(jnp.bfloat16)

    def _pad_vec(v):
        if P_pad != P:
            v = jnp.pad(v, ((0, P_pad - P),))
        return v.astype(jnp.float32)

    packed = jnp.stack([_pad_vec(b), _pad_vec(gamma), _pad_vec(beta)], axis=0)
    return w_bf16, packed, P


def _choose_block_k(H_pad, P_pad, *, resident_bytes=12 * 1024 * 1024, cap_k=2048):
    # Keep the whole (bf16) weight resident when it fits -> single K step.
    if H_pad * P_pad * 2 <= resident_bytes:
        return H_pad
    # Otherwise: largest multiple of 128 that divides H_pad and is <= cap_k.
    units = H_pad // 128
    best = 1
    for d in range(1, units + 1):
        if units % d == 0 and 128 * d <= cap_k:
            best = d
    return 128 * best


def projection_forward(x, w_bf16, packed_params, p_real, *, block_batch=None, block_k=None):
    """x: (B, H) float.  w_bf16: (H_pad, P_pad) bf16.  packed_params: (3, P_pad) f32."""
    x = x.astype(jnp.float32)
    B, H = x.shape
    H_pad, P_pad = w_bf16.shape
    assert H_pad == _round_up(H, 128), "weight was prepared for a different hidden size"

    # ---- batch tile: multiple of 16, <= 512; >= 2 blocks when B allows (v7x megacore).
    B_pad_min = _round_up(B, 16)
    if block_batch is None:
        n_b = max(1, -(-B_pad_min // 512))
        if B > 16:
            n_b = max(n_b, 2)
        block_batch = _round_up(-(-B_pad_min // n_b), 16)
    else:
        block_batch = _round_up(max(block_batch, 16), 16)

    # ---- K tile: divisor of H_pad (no reduction-dim padding waste).
    if block_k is None:
        block_k = _choose_block_k(H_pad, P_pad)
    else:
        block_k = max(128, _round_up(block_k, 128))
        while H_pad % block_k != 0:
            block_k -= 128

    # ---- keep the footprint well inside VMEM (shrink batch tile if needed).
    def _need(bb):
        return (2 * block_k * P_pad * 2          # weight tiles (bf16, double buffered)
                + 2 * bb * block_k * 4           # x tiles (f32)
                + 2 * bb * P_pad * 4             # output tiles (f32, accumulator)
                + 2 * 3 * P_pad * 4)             # packed bias/gamma/beta
    while block_batch > 16 and _need(block_batch) > 40 * 1024 * 1024:
        block_batch = max(16, _round_up(block_batch // 2, 16))

    B_pad = _round_up(B, block_batch)

    x_p = x
    if (B_pad, H_pad) != (B, H):
        x_p = jnp.pad(x, ((0, B_pad - B), (0, H_pad - H)))

    grid = (B_pad // block_batch, H_pad // block_k)
    vmem_limit = int(min(max(int(1.5 * _need(block_batch)), 32 * 1024 * 1024),
                         48 * 1024 * 1024))

    kernel = functools.partial(_projection_kernel, p_real=p_real,
                               tanh_bf16=_use_bf16_tanh())

    out_padded = pl.pallas_call(
        kernel,
        out_shape=jax.ShapeDtypeStruct((B_pad, P_pad), jnp.float32),
        grid_spec=pltpu.PrefetchScalarGridSpec(
            num_scalar_prefetch=0,
            grid=grid,
            in_specs=[
                pl.BlockSpec((block_batch, block_k), lambda i, k: (i, k)),  # x tile
                pl.BlockSpec((block_k, P_pad), lambda i, k: (k, 0)),        # weight tile
                pl.BlockSpec((3, P_pad), lambda i, k: (0, 0)),              # bias/gamma/beta
            ],
            out_specs=pl.BlockSpec((block_batch, P_pad), lambda i, k: (i, 0)),
        ),
        compiler_params=pltpu.CompilerParams(
            dimension_semantics=("parallel", "arbitrary"),
            vmem_limit_bytes=vmem_limit,
        ),
    )(x_p, w_bf16, packed_params)

    return out_padded[:B, :p_real]


# ----------------------------------------------------------------------------- reference / test
def reference_forward(x, w_t, b, gamma, beta):
    y = jnp.tanh(x) @ w_t + b
    mean = jnp.mean(y, axis=-1, keepdims=True)
    var = jnp.mean((y - mean) ** 2, axis=-1, keepdims=True)
    return (y - mean) / jnp.sqrt(var + LN_EPS) * gamma + beta


def _make_params(key, hidden_size, projection_size):
    # Matches module __init__: fc.weight ~ U(-0.01, 0.01) (PyTorch shape (P, H),
    # stored here as its transpose (H, P)); fc.bias = 0; ln.weight = 1; ln.bias = 0.
    initrange = 0.01
    w = jax.random.uniform(key, (projection_size, hidden_size),
                           minval=-initrange, maxval=initrange, dtype=jnp.float32)
    return w.T, jnp.zeros((projection_size,), jnp.float32), \
        jnp.ones((projection_size,), jnp.float32), jnp.zeros((projection_size,), jnp.float32)


if __name__ == "__main__":
    key = jax.random.PRNGKey(0)
    k1, k2, k3, k4, k5, k6 = jax.random.split(key, 6)

    def run_case(xkey, wkey, batch, hidden, proj, **kw):
        w_t, b, gamma, beta = _make_params(wkey, hidden, proj)
        x = jax.random.normal(xkey, (batch, hidden), dtype=jnp.float32)
        # Weight pad + bf16 cast hoisted out of the hot path (done once per weight).
        w_bf16, packed, p_real = prepare_projection_params(w_t, b, gamma, beta)
        out = jax.block_until_ready(
            projection_forward(x, w_bf16, packed, p_real, **kw))
        ref = reference_forward(x, w_t, b, gamma, beta)
        assert out.shape == (batch, proj)
        # bf16 MXU inputs (and bf16 tanh on v6e/v7x) with f32 accumulation.
        assert jnp.allclose(out, ref, atol=5e-2), \
            f"mismatch vs reference for shape ({batch},{hidden},{proj})"

    # Case 1: small shapes implied by the module (batch=8, hidden=32, proj=64).
    run_case(k1, k2, 8, 32, 64)
    # Case 2: >=2 batch blocks (v7x megacore), resident weight (single K step),
    #         padded projection axis (P=200 -> 256) without lane masks.
    run_case(k3, k4, 40, 640, 200)
    # Case 3: forces a multi-step K reduction (accumulation directly into o_ref).
    run_case(k5, k6, 24, 256, 128, block_batch=16, block_k=128)

    print("KERNEL_OK")
</pallas_src>

<mosaic_0001>
module attributes {stable_mosaic.version = 11 : i64} {
  func.func @_projection_kernel(%arg0: i32, %arg1: i32, %arg2: memref<16x128xf32, #tpu.memory_space<vmem>>, %arg3: memref<128x128xbf16, #tpu.memory_space<vmem>>, %arg4: memref<3x128xf32, #tpu.memory_space<vmem>>, %arg5: memref<16x128xf32, #tpu.memory_space<vmem>>) attributes {dimension_semantics = [#tpu.dimension_semantics<parallel>, #tpu.dimension_semantics<arbitrary>], iteration_bounds = array<i64: 1, 1>, scalar_prefetch = 0 : i64, scratch_operands = 0 : i64, tpu.core_type = #tpu.core_type<tc>, window_params = [{transform_indices = @transform_0, window_bounds = array<i64: 16, 128>}, {transform_indices = @transform_1, window_bounds = array<i64: 128, 128>}, {pipeline_mode = #tpu.pipeline_mode<synchronous>, transform_indices = @transform_2, window_bounds = array<i64: 3, 128>}, {transform_indices = @transform_3, window_bounds = array<i64: 16, 128>}]} {
    %c0 = arith.constant 0 : index
    %c0_0 = arith.constant 0 : index
    %0 = vector.load %arg2[%c0, %c0_0] : memref<16x128xf32, #tpu.memory_space<vmem>>, vector<16x128xf32>
    %1 = math.tanh %0 : vector<16x128xf32>
    %2 = arith.truncf %1 : vector<16x128xf32> to vector<16x128xbf16>
    %c0_1 = arith.constant 0 : index
    %c0_2 = arith.constant 0 : index
    %3 = vector.load %arg3[%c0_1, %c0_2] : memref<128x128xbf16, #tpu.memory_space<vmem>>, vector<128x128xbf16>
    %cst = arith.constant dense<0.000000e+00> : vector<16x128xf32>
    %4 = tpu.matmul %2, %3, %cst {dimension_numbers = #tpu.dot_dimension_numbers<[1], [0], [0], [1], [0, 0, 1, 1], [], []>} : vector<16x128xbf16>, vector<128x128xbf16>, vector<16x128xf32> -> vector<16x128xf32>
    %c0_i32 = arith.constant 0 : i32
    %5 = arith.cmpi eq, %arg1, %c0_i32 : i32
    %6 = arith.extui %5 : i1 to i32
    %c0_i32_3 = arith.constant 0 : i32
    %7 = arith.cmpi ne, %6, %c0_i32_3 : i32
    scf.if %7 {
      %c0_8 = arith.constant 0 : index
      %c0_9 = arith.constant 0 : index
      %14 = vector.load %arg5[%c0_8, %c0_9] : memref<16x128xf32, #tpu.memory_space<vmem>>, vector<16x128xf32>
      tpu.vector_store %arg5[%c0_8, %c0_9], %4 {strides = array<i32>} : memref<16x128xf32, #tpu.memory_space<vmem>>, vector<16x128xf32>,
    } else {
    }
    %c0_i32_4 = arith.constant 0 : i32
    %8 = arith.cmpi ne, %arg1, %c0_i32_4 : i32
    %9 = arith.extui %8 : i1 to i32
    %c0_i32_5 = arith.constant 0 : i32
    %10 = arith.cmpi ne, %9, %c0_i32_5 : i32
    scf.if %10 {
      %c0_8 = arith.constant 0 : index
      %c0_9 = arith.constant 0 : index
      %14 = vector.load %arg5[%c0_8, %c0_9] : memref<16x128xf32, #tpu.memory_space<vmem>>, vector<16x128xf32>
      %15 = arith.addf %14, %4 : vector<16x128xf32>
      %c0_10 = arith.constant 0 : index
      %c0_11 = arith.constant 0 : index
      %16 = vector.load %arg5[%c0_10, %c0_11] : memref<16x128xf32, #tpu.memory_space<vmem>>, vector<16x128xf32>
      tpu.vector_store %arg5[%c0_10, %c0_11], %15 {strides = array<i32>} : memref<16x128xf32, #tpu.memory_space<vmem>>, vector<16x128xf32>,
    } else {
    }
    %c0_i32_6 = arith.constant 0 : i32
    %11 = arith.cmpi eq, %arg1, %c0_i32_6 : i32
    %12 = arith.extui %11 : i1 to i32
    %c0_i32_7 = arith.constant 0 : i32
    %13 = arith.cmpi ne, %12, %c0_i32_7 : i32
    scf.if %13 {
      %c0_8 = arith.constant 0 : index
      %c0_9 = arith.constant 0 : index
      %14 = vector.load %arg4[%c0_8, %c0_9] : memref<3x128xf32, #tpu.memory_space<vmem>>, vector<3x128xf32>
      %c0_10 = arith.constant 0 : index
      %c0_11 = arith.constant 0 : index
      %15 = vector.load %arg5[%c0_10, %c0_11] : memref<16x128xf32, #tpu.memory_space<vmem>>, vector<16x128xf32>
      %16 = vector.extract_strided_slice %14 {offsets = [0, 0], sizes = [1, 128], strides = [1, 1]} : vector<3x128xf32> to vector<1x128xf32>
      %17 = vector.broadcast %16 : vector<1x128xf32> to vector<16x128xf32>
      %18 = arith.addf %15, %17 : vector<16x128xf32>
      %cst_12 = arith.constant dense<0.000000e+00> : vector<16xf32>
      %19 = vector.multi_reduction <add>, %18, %cst_12 [1] : vector<16x128xf32> to vector<16xf32>
      %20 = vector.shape_cast %19 : vector<16xf32> to vector<16x1xf32>
      %cst_13 = arith.constant 1.562500e-02 : f32
      %21 = vector.broadcast %cst_13 : f32 to vector<16x1xf32>
      %22 = arith.mulf %20, %21 : vector<16x1xf32>
      %23 = arith.mulf %18, %18 : vector<16x128xf32>
      %cst_14 = arith.constant dense<0.000000e+00> : vector<16xf32>
      %24 = vector.multi_reduction <add>, %23, %cst_14 [1] : vector<16x128xf32> to vector<16xf32>
      %25 = vector.shape_cast %24 : vector<16xf32> to vector<16x1xf32>
      %cst_15 = arith.constant 1.562500e-02 : f32
      %26 = vector.broadcast %cst_15 : f32 to vector<16x1xf32>
      %27 = arith.mulf %25, %26 : vector<16x1xf32>
      %28 = arith.mulf %22, %22 : vector<16x1xf32>
      %29 = arith.subf %27, %28 : vector<16x1xf32>
      %30 = vector.broadcast %22 : vector<16x1xf32> to vector<16x128xf32>
      %31 = arith.subf %18, %30 : vector<16x128xf32>
      %cst_16 = arith.constant 9.99999974E-6 : f32
      %32 = vector.broadcast %cst_16 : f32 to vector<16x1xf32>
      %33 = arith.addf %29, %32 : vector<16x1xf32>
      %34 = math.rsqrt %33 : vector<16x1xf32>
      %35 = vector.broadcast %34 : vector<16x1xf32> to vector<16x128xf32>
      %36 = arith.mulf %31, %35 : vector<16x128xf32>
      %37 = vector.extract_strided_slice %14 {offsets = [1, 0], sizes = [1, 128], strides = [1, 1]} : vector<3x128xf32> to vector<1x128xf32>
      %38 = vector.broadcast %37 : vector<1x128xf32> to vector<16x128xf32>
      %39 = arith.mulf %36, %38 : vector<16x128xf32>
      %40 = vector.extract_strided_slice %14 {offsets = [2, 0], sizes = [1, 128], strides = [1, 1]} : vector<3x128xf32> to vector<1x128xf32>
      %41 = vector.broadcast %40 : vector<1x128xf32> to vector<16x128xf32>
      %42 = arith.addf %39, %41 : vector<16x128xf32>
      %c0_17 = arith.constant 0 : index
      %c0_18 = arith.constant 0 : index
      %43 = vector.load %arg5[%c0_17, %c0_18] : memref<16x128xf32, #tpu.memory_space<vmem>>, vector<16x128xf32>
      tpu.vector_store %arg5[%c0_17, %c0_18], %42 {strides = array<i32>} : memref<16x128xf32, #tpu.memory_space<vmem>>, vector<16x128xf32>,
    } else {
    }
    return
  }
  func.func @transform_0(%arg0: i32, %arg1: i32) -> (i32, i32) {
    %c0_i32 = arith.constant 0 : i32
    return %arg0, %arg1 : i32, i32
  }
  func.func @transform_1(%arg0: i32, %arg1: i32) -> (i32, i32) {
    %c0_i32 = arith.constant 0 : i32
    %c0_i32_0 = arith.constant 0 : i32
    return %arg1, %c0_i32 : i32, i32
  }
  func.func @transform_2(%arg0: i32, %arg1: i32) -> (i32, i32) {
    %c0_i32 = arith.constant 0 : i32
    %c0_i32_0 = arith.constant 0 : i32
    %c0_i32_1 = arith.constant 0 : i32
    return %c0_i32, %c0_i32_0 : i32, i32
  }
  func.func @transform_3(%arg0: i32, %arg1: i32) -> (i32, i32) {
    %c0_i32 = arith.constant 0 : i32
    %c0_i32_0 = arith.constant 0 : i32
    return %arg0, %c0_i32 : i32, i32
  }
}

</mosaic_0001>

<llo_original>
// kernel: tpu_custom_call.1
$region0: #{tpu_custom_call.1}
  #allocation0 [shape = 'u32[]', space=smem, size = 0x4, offset = 0x4, fixed_abs, tag = 'smem constant byte address 0x4 - core index']
  #allocation1 [shape = 'u32[144,128]{1,0:T(1,128)}', space=vmem, size = 0x12000, scoped, tag = 'internal scratch']
  %s0 = inlined_call_operand.hbm [shape: f32[16,128], index: 0, kind: input, shape index: {}]
  %s1 = inlined_call_operand.hbm [shape: bf16[128,128], index: 1, kind: input, shape index: {}]
  %s2 = inlined_call_operand.vmem [shape: f32[3,128], index: 2, kind: input, shape index: {}]
  %s3 = inlined_call_operand.hbm [shape: f32[16,128], index: 3, kind: output, shape index: {}]
  %s4 = sld [smem:[#allocation0]]
  $region42: #{tpu_custom_call.1} parent=0
    _
  %s6 = ssub.s32 1, %s4
  %s7 = scalar_select 0, %s6, %s4
  $region1: #{tpu_custom_call.1} parent=0
    #allocation2 [shape = 'u8[8192]{0}', space=vmem, size = 0x2000, scoped, tag = 'input window, operand 0, single buffered']
    #allocation3 [shape = 's32[1]{0}', space=sflag, size = 0x4, scoped, tag = 'scoped memory for tpu_custom_call.1']
    #allocation4 [shape = 's32[1]{0}', space=sflag, size = 0x4, scoped, tag = 'scoped memory for tpu_custom_call.1']
    #allocation5 [shape = 'u8[32768]{0}', space=vmem, size = 0x8000, scoped, tag = 'input window, operand 1, single buffered']
    #allocation6 [shape = 's32[1]{0}', space=sflag, size = 0x4, scoped, tag = 'scoped memory for tpu_custom_call.1']
    #allocation7 [shape = 'u8[8192]{0}', space=vmem, size = 0x2000, scoped, tag = 'output window, operand 0, single buffered']
    %8 = vsyncpa [#allocation3], 0
    %9 = vsyncpa [#allocation6], 0
    %10 = vsyncpa [#allocation4], 0
    // Predicated region
    $region2: #{tpu_custom_call.1} parent=1 // pred_check
      _
    $region3: #{tpu_custom_call.1} parent=1 // pred_check_branch
      %12 = sbr.rel (0) target = $region5
    $region4: #{tpu_custom_call.1} parent=1 // pred_region
      %s14 = ssub.s32 256, 256
      %15 = vsyncadd [#allocation3], %s14
      %s16 = sshll.u32 [#allocation2], 4
      %s17 = int_to_ptr.vmem [resolvable:$true] %s16
      %22 = dma.hbm_to_vmem [thread:$0]  %s0, 256, %s17, [#allocation3], 128, 128, 8
    $region5: #{tpu_custom_call.1} parent=1 // pred_fallthru
      _
    // Predicated region
    $region6: #{tpu_custom_call.1} parent=1 // pred_check
      _
    $region7: #{tpu_custom_call.1} parent=1 // pred_check_branch
      %24 = sbr.rel (0) target = $region9
    $region8: #{tpu_custom_call.1} parent=1 // pred_region
      %s26 = ssub.s32 1024, 1024
      %27 = vsyncadd [#allocation6], %s26
      %s28 = sshll.u32 [#allocation5], 4
      %s29 = int_to_ptr.vmem [resolvable:$true] %s28
      %34 = dma.hbm_to_vmem [thread:$0]  %s1, 1024, %s29, [#allocation6], 64, 64, 4
    $region9: #{tpu_custom_call.1} parent=1 // pred_fallthru
      _
    // Predicated region
    $region10: #{tpu_custom_call.1} parent=1 // pred_check
      _
    $region11: #{tpu_custom_call.1} parent=1 // pred_check_branch
      %36 = sbr.rel (0) target = $region13
    $region12: #{tpu_custom_call.1} parent=1 // pred_region
      _
    $region13: #{tpu_custom_call.1} parent=1 // pred_fallthru
      _
    // Predicated region
    $region14: #{tpu_custom_call.1} parent=1 // pred_check
      _
    $region15: #{tpu_custom_call.1} parent=1 // pred_check_branch
      %38 = sbr.rel (0) target = $region17
    $region16: #{tpu_custom_call.1} parent=1 // pred_region
      %39 = dma.done [#allocation3], 256
    $region17: #{tpu_custom_call.1} parent=1 // pred_fallthru
      _
    // Predicated region
    $region18: #{tpu_custom_call.1} parent=1 // pred_check
      _
    $region19: #{tpu_custom_call.1} parent=1 // pred_check_branch
      %41 = sbr.rel (0) target = $region21
    $region20: #{tpu_custom_call.1} parent=1 // pred_region
      %42 = dma.done [#allocation6], 1024
    $region21: #{tpu_custom_call.1} parent=1 // pred_fallthru
      _
    %v44 = vld [vmem:[#allocation2] sm:$0xff]
    %v45 = vld [vmem:[#allocation2 + $0x8] sm:$0xff]
    %v46 = vtanh.pop %v44
    %v47 = vtanh.pop %v45
    %v48 = vpack.c.bf16 %v47, %v46
    %v49 = vld [vmem:[#allocation5] sm:$0xf]
    %v50 = vld [vmem:[#allocation5 + $0x4] sm:$0xf]
    %v51 = vld [vmem:[#allocation5 + $0x8] sm:$0xf]
    %v52 = vld [vmem:[#allocation5 + $0xc] sm:$0xf]
    %v53 = vld [vmem:[#allocation5 + $0x10] sm:$0xf]
    %v54 = vld [vmem:[#allocation5 + $0x14] sm:$0xf]
    %v55 = vld [vmem:[#allocation5 + $0x18] sm:$0xf]
    %v56 = vld [vmem:[#allocation5 + $0x1c] sm:$0xf]
    %v57 = vld [vmem:[#allocation5 + $0x20] sm:$0xf]
    %v58 = vld [vmem:[#allocation5 + $0x24] sm:$0xf]
    %v59 = vld [vmem:[#allocation5 + $0x28] sm:$0xf]
    %v60 = vld [vmem:[#allocation5 + $0x2c] sm:$0xf]
    %v61 = vld [vmem:[#allocation5 + $0x30] sm:$0xf]
    %v62 = vld [vmem:[#allocation5 + $0x34] sm:$0xf]
    %v63 = vld [vmem:[#allocation5 + $0x38] sm:$0xf]
    %v64 = vld [vmem:[#allocation5 + $0x3c] sm:$0xf]
    %v81 = vunpack.c.l.b16 %v49
    %v82 = vunpack.c.l.b16 %v50
    %v83 = vunpack.c.l.b16 %v51
    %v84 = vunpack.c.l.b16 %v52
    %v85 = vunpack.c.l.b16 %v53
    %v86 = vunpack.c.l.b16 %v54
    %v87 = vunpack.c.l.b16 %v55
    %v88 = vunpack.c.l.b16 %v56
    %v89 = vunpack.c.l.b16 %v57
    %v90 = vunpack.c.l.b16 %v58
    %v91 = vunpack.c.l.b16 %v59
    %v92 = vunpack.c.l.b16 %v60
    %v93 = vunpack.c.l.b16 %v61
    %v94 = vunpack.c.l.b16 %v62
    %v95 = vunpack.c.l.b16 %v63
    %v96 = vunpack.c.l.b16 %v64
    %v97 = vpack.c.b16 %v82, %v81
    %v98 = vpack.c.b16 %v84, %v83
    %v99 = vpack.c.b16 %v86, %v85
    %v100 = vpack.c.b16 %v88, %v87
    %v101 = vpack.c.b16 %v90, %v89
    %v102 = vpack.c.b16 %v92, %v91
    %v103 = vpack.c.b16 %v94, %v93
    %v104 = vpack.c.b16 %v96, %v95
    %113 = vmatprep.subr.bf16.mxu0 0
    %114 = vmatpush1.bf16.msra.mxu0 %v97
    %115 = vmatprep.subr.bf16.mxu0 0
    %116 = vmatpush1.bf16.msra.mxu0 %v98
    %117 = vmatprep.subr.bf16.mxu0 0
    %118 = vmatpush1.bf16.msra.mxu0 %v99
    %119 = vmatprep.subr.bf16.mxu0 0
    %120 = vmatpush1.bf16.msra.mxu0 %v100
    %121 = vmatprep.subr.bf16.mxu0 0
    %122 = vmatpush1.bf16.msra.mxu0 %v101
    %123 = vmatprep.subr.bf16.mxu0 0
    %124 = vmatpush1.bf16.msra.mxu0 %v102
    %125 = vmatprep.subr.bf16.mxu0 0
    %126 = vmatpush1.bf16.msra.mxu0 %v103
    %127 = vmatprep.subr.bf16.mxu0 0
    %128 = vmatpush1.bf16.msra.mxu0 %v104
    %129 = vmatprep.subr.bf16.mxu0 0
    %130 = vmatpush1.bf16.msra.mxu0 0
    %131 = vmatprep.subr.bf16.mxu0 0
    %132 = vmatpush1.bf16.msra.mxu0 0
    %133 = vmatprep.subr.bf16.mxu0 0
    %134 = vmatpush1.bf16.msra.mxu0 0
    %135 = vmatprep.subr.bf16.mxu0 0
    %136 = vmatpush1.bf16.msra.mxu0 0
    %137 = vmatprep.subr.bf16.mxu0 0
    %138 = vmatpush1.bf16.msra.mxu0 0
    %139 = vmatprep.subr.bf16.mxu0 0
    %140 = vmatpush1.bf16.msra.mxu0 0
    %141 = vmatprep.subr.bf16.mxu0 0
    %142 = vmatpush1.bf16.msra.mxu0 0
    %143 = vmatprep.subr.bf16.mxu0 0
    %144 = vmatpush1.bf16.msra.mxu0 0
    %145 = vmatprep.mubr.bf16.mxu0 0
    %146 = vmatmul.mubr.bf16.gmra.mrb[0].mxu0 %v48
    %v147 = vpop.f32.mrb[0].mxu0
    %v148 = vadd.f32 0.0, %v147
    %v149 = vpop.f32.mrb[0].mxu0
    %v150 = vpop.f32.mrb[0].mxu0
    %v151 = vadd.f32 0.0, %v150
    %v152 = vpop.f32.mrb[0].mxu0
    %153 = vdwg.mxu0
    %p154 = scmp.eq.s32.totalorder 0, 0
    // Predicated region
    $region22: #{tpu_custom_call.1} parent=1 // pred_check
      %p155 = pneg %p154
    $region23: #{tpu_custom_call.1} parent=1 // pred_check_branch
      %157 = sbr.rel (%p155) target = $region25
    $region24: #{tpu_custom_call.1} parent=1 // pred_region
      %158 = vst [vmem:[#allocation7] sm:$0xff] %v148
      %159 = vst [vmem:[#allocation7 + $0x8] sm:$0xff] %v151
    $region25: #{tpu_custom_call.1} parent=1 // pred_fallthru
      _
    %p160 = scmp.ne.s32.totalorder 0, 0
    // Predicated region
    $region26: #{tpu_custom_call.1} parent=1 // pred_check
      %p161 = pneg %p160
    $region27: #{tpu_custom_call.1} parent=1 // pred_check_branch
      %163 = sbr.rel (%p161) target = $region29
    $region28: #{tpu_custom_call.1} parent=1 // pred_region
      %v164 = vld [vmem:[#allocation7] sm:$0xff]
      %v165 = vld [vmem:[#allocation7 + $0x8] sm:$0xff]
      %v166 = vadd.f32 %v164, %v148
      %v167 = vadd.f32 %v165, %v151
      %168 = vst [vmem:[#allocation7] sm:$0xff] %v166
      %169 = vst [vmem:[#allocation7 + $0x8] sm:$0xff] %v167
    $region29: #{tpu_custom_call.1} parent=1 // pred_fallthru
      _
    // Predicated region
    $region30: #{tpu_custom_call.1} parent=1 // pred_check
      %p170 = pneg %p154
    $region31: #{tpu_custom_call.1} parent=1 // pred_check_branch
      %172 = sbr.rel (%p170) target = $region33
    $region32: #{tpu_custom_call.1} parent=1 // pred_region
      %v173 = vld [vmem:[%s2] sm:$0x7]
      %v174 = vld [vmem:[#allocation7] sm:$0xff]
      %v175 = vld [vmem:[#allocation7 + $0x8] sm:$0xff]
      %v176 = vlaneseq
      %v177 = vshrl.u32 %v176, 7
      %v178 = vsub.s32 0, %v177
      %v179 = vrot.slane %v173, %v178
      %v180 = vadd.f32 %v174, %v179
      %v181 = vadd.f32 %v175, %v179
      %182 = vadd.xlane.f32.xlu0 %v180
      %v183 = vpop.xlane.xlu0 %182
      %184 = vadd.xlane.f32.xlu0 %v181
      %v185 = vpop.xlane.xlu0 %184
      %v186 = vmul.f32 %v183, 0.015625
      %v187 = vmul.f32 %v185, 0.015625
      %v188 = vmul.f32 %v180, %v180
      %v189 = vmul.f32 %v181, %v181
      %190 = vadd.xlane.f32.xlu0 %v188
      %v191 = vpop.xlane.xlu0 %190
      %192 = vadd.xlane.f32.xlu0 %v189
      %v193 = vpop.xlane.xlu0 %192
      %v194 = vmul.f32 %v191, 0.015625
      %v195 = vmul.f32 %v193, 0.015625
      %v196 = vmul.f32 %v186, %v186
      %v197 = vmul.f32 %v187, %v187
      %v198 = vsub.f32 %v194, %v196
      %v199 = vsub.f32 %v195, %v197
      %v200 = vsub.f32 %v180, %v186
      %v201 = vsub.f32 %v181, %v187
      %v202 = vadd.f32 %v198, 1e-05
      %v203 = vadd.f32 %v199, 1e-05
      %v204 = vrsqrt.pop %v202
      %v205 = vrsqrt.pop %v203
      %v206 = vmul.f32 %v200, %v204
      %v207 = vmul.f32 %v201, %v205
      %v208 = vlaneseq
      %v209 = vshrl.u32 %v208, 7
      %v210 = vsub.s32 1, %v209
      %v211 = vrot.slane %v173, %v210
      %v212 = vmul.f32 %v206, %v211
      %v213 = vmul.f32 %v207, %v211
      %v214 = vlaneseq
      %v215 = vshrl.u32 %v214, 7
      %v216 = vsub.s32 2, %v215
      %v217 = vrot.slane %v173, %v216
      %v218 = vadd.f32 %v212, %v217
      %v219 = vadd.f32 %v213, %v217
      %220 = vst [vmem:[#allocation7] sm:$0xff] %v218
      %221 = vst [vmem:[#allocation7 + $0x8] sm:$0xff] %v219
    $region33: #{tpu_custom_call.1} parent=1 // pred_fallthru
      _
    // Predicated region
    $region34: #{tpu_custom_call.1} parent=1 // pred_check
      _
    $region35: #{tpu_custom_call.1} parent=1 // pred_check_branch
      %223 = sbr.rel (0) target = $region37
    $region36: #{tpu_custom_call.1} parent=1 // pred_region
      %s225 = ssub.s32 256, 256
      %226 = vsyncadd [#allocation4], %s225
      %s227 = sshll.u32 [#allocation7], 4
      %s228 = int_to_ptr.vmem [resolvable:$true] %s227
      %233 = dma.vmem_to_hbm [thread:$0]  %s228, 256, %s3, [#allocation4], 128, 128, 8
    $region37: #{tpu_custom_call.1} parent=1 // pred_fallthru
      _
    // Predicated region
    $region38: #{tpu_custom_call.1} parent=1 // pred_check
      _
    $region39: #{tpu_custom_call.1} parent=1 // pred_check_branch
      %235 = sbr.rel (0) target = $region41
    $region40: #{tpu_custom_call.1} parent=1 // pred_region
      %236 = dma.done [#allocation4], 256
    $region41: #{tpu_custom_call.1} parent=1 // pred_fallthru
      _
    %237 = vsyncpa [#allocation3], 1
    %238 = vsyncpa [#allocation6], 1
    %239 = vsyncpa [#allocation4], 1

</llo_original>
